<compile_context>
chip_gen: v5e
topology: v5e:2x2
jax: 0.10.0
libtpu: 0.0.40
codegen_flags: <defaults>
</compile_context>

<pallas_src>
import jax
import jax.numpy as jnp
from jax.experimental import pallas as pl
from jax.experimental.pallas import tpu as pltpu


def _sum_channels_kernel(x0_ref, x5_ref, o_ref):
    # x0_ref / x5_ref: (1, 1, TH, W) VMEM tiles holding only channel 0 / 5 of
    # the current batch element and row-tile.  o_ref: (1, TH, W).
    o_ref[0] = x0_ref[0, 0] + x5_ref[0, 0]


def _pick_row_tile(H, W, itemsize, target_block_bytes=4 * 1024 * 1024):
    """Largest row tile TH that divides H, is a multiple of 8 (or equals H),
    and keeps one (TH, W) block under ~4 MiB so that 2 inputs + 1 output,
    each double-buffered, stay well inside v7x's 32 MiB scoped VMEM."""
    if H * W * itemsize <= target_block_bytes:
        return H
    fitting = [th for th in range(8, H, 8)
               if H % th == 0 and th * W * itemsize <= target_block_bytes]
    if fitting:
        return max(fitting)
    divisors8 = [th for th in range(8, H, 8) if H % th == 0]
    # TODO(synk): if even the smallest multiple-of-8 row tile exceeds the VMEM
    # budget (extremely wide W), raise vmem_limit_bytes instead of re-tiling W.
    return min(divisors8) if divisors8 else H


def sum_channels(x):
    """Pallas equivalent of `x[:, 0] + x[:, 5]` for NCHW input x."""
    N, C, H, W = x.shape
    assert C >= 6, "need at least 6 channels to index channel 5"

    th = _pick_row_tile(H, W, x.dtype.itemsize)
    grid = (N, H // th)

    # Fetch only the two needed channel slices (block size 1 along C).
    # Last two block dims are (th, W): th is a multiple of 8 or equals H,
    # W equals the full array dim, so the (8, 128) tiling rule is satisfied.
    x0_spec = pl.BlockSpec((1, 1, th, W), lambda b, h: (b, 0, h, 0))
    x5_spec = pl.BlockSpec((1, 1, th, W), lambda b, h: (b, 5, h, 0))
    out_spec = pl.BlockSpec((1, th, W), lambda b, h: (b, h, 0))

    return pl.pallas_call(
        _sum_channels_kernel,
        out_shape=jax.ShapeDtypeStruct((N, H, W), x.dtype),
        grid_spec=pl.GridSpec(
            grid=grid,
            in_specs=[x0_spec, x5_spec],
            out_specs=out_spec,
        ),
        compiler_params=pltpu.CompilerParams(
            dimension_semantics=("parallel", "parallel"),
        ),
    )(x, x)  # same array passed twice; each spec DMAs only its own channel


if __name__ == "__main__":
    key = jax.random.PRNGKey(0)

    # Matches torch.nn.Parameter(torch.tensor([1.0])); unused in forward,
    # kept for structural fidelity.
    weight = jnp.array([1.0], dtype=jnp.float32)

    # Small shape consistent with the forward pass: need >= 6 channels.
    N, C, H, W = 2, 8, 16, 16
    x = jax.random.normal(key, (N, C, H, W), dtype=jnp.float32)

    out = sum_channels(x)
    out = jax.block_until_ready(out)

    # Reference check in plain JAX.
    ref = x[:, 0] + x[:, 5]
    assert out.shape == (N, H, W)
    assert jnp.allclose(out, ref, atol=1e-6), "mismatch vs reference"

    print("KERNEL_OK")
</pallas_src>

<mosaic_0001>
module attributes {stable_mosaic.version = 11 : i64} {
  func.func @_sum_channels_kernel(%arg0: i32, %arg1: i32, %arg2: memref<1x1x16x16xf32, #tpu.memory_space<vmem>>, %arg3: memref<1x1x16x16xf32, #tpu.memory_space<vmem>>, %arg4: memref<1x16x16xf32, #tpu.memory_space<vmem>>) attributes {dimension_semantics = [#tpu.dimension_semantics<parallel>, #tpu.dimension_semantics<parallel>], iteration_bounds = array<i64: 2, 1>, scalar_prefetch = 0 : i64, scratch_operands = 0 : i64, tpu.core_type = #tpu.core_type<tc>, window_params = [{transform_indices = @transform_0, window_bounds = array<i64: 1, 1, 16, 16>}, {transform_indices = @transform_1, window_bounds = array<i64: 1, 1, 16, 16>}, {transform_indices = @transform_2, window_bounds = array<i64: 1, 16, 16>}]} {
    %c0 = arith.constant 0 : index
    %c0_0 = arith.constant 0 : index
    %c0_1 = arith.constant 0 : index
    %c0_2 = arith.constant 0 : index
    %0 = vector.load %arg2[%c0, %c0_0, %c0_1, %c0_2] : memref<1x1x16x16xf32, #tpu.memory_space<vmem>>, vector<1x1x16x16xf32>
    %1 = vector.shape_cast %0 : vector<1x1x16x16xf32> to vector<16x16xf32>
    %c0_3 = arith.constant 0 : index
    %c0_4 = arith.constant 0 : index
    %c0_5 = arith.constant 0 : index
    %c0_6 = arith.constant 0 : index
    %2 = vector.load %arg3[%c0_3, %c0_4, %c0_5, %c0_6] : memref<1x1x16x16xf32, #tpu.memory_space<vmem>>, vector<1x1x16x16xf32>
    %3 = vector.shape_cast %2 : vector<1x1x16x16xf32> to vector<16x16xf32>
    %4 = arith.addf %1, %3 : vector<16x16xf32>
    %c0_7 = arith.constant 0 : index
    %c0_8 = arith.constant 0 : index
    %c0_9 = arith.constant 0 : index
    %5 = vector.load %arg4[%c0_7, %c0_8, %c0_9] : memref<1x16x16xf32, #tpu.memory_space<vmem>>, vector<1x16x16xf32>
    %6 = vector.shape_cast %5 : vector<1x16x16xf32> to vector<16x16xf32>
    %7 = vector.shape_cast %4 : vector<16x16xf32> to vector<1x16x16xf32>
    tpu.vector_store %arg4[%c0_7, %c0_8, %c0_9], %7 {strides = array<i32>} : memref<1x16x16xf32, #tpu.memory_space<vmem>>, vector<1x16x16xf32>,
    return
  }
  func.func @transform_0(%arg0: i32, %arg1: i32) -> (i32, i32, i32, i32) {
    %c0_i32 = arith.constant 0 : i32
    %c0_i32_0 = arith.constant 0 : i32
    %c0_i32_1 = arith.constant 0 : i32
    return %arg0, %c0_i32, %arg1, %c0_i32_0 : i32, i32, i32, i32
  }
  func.func @transform_1(%arg0: i32, %arg1: i32) -> (i32, i32, i32, i32) {
    %c5_i32 = arith.constant 5 : i32
    %c0_i32 = arith.constant 0 : i32
    %c0_i32_0 = arith.constant 0 : i32
    return %arg0, %c5_i32, %arg1, %c0_i32 : i32, i32, i32, i32
  }
  func.func @transform_2(%arg0: i32, %arg1: i32) -> (i32, i32, i32) {
    %c0_i32 = arith.constant 0 : i32
    %c0_i32_0 = arith.constant 0 : i32
    return %arg0, %arg1, %c0_i32 : i32, i32, i32
  }
}

</mosaic_0001>

<llo_original>
// kernel: tpu_custom_call.1
$region0: #{tpu_custom_call.1}
  #allocation0 [shape = 'u32[]', space=smem, size = 0x4, offset = 0x4, fixed_abs, tag = 'smem constant byte address 0x4 - core index']
  #allocation1 [shape = 'u32[72,128]{1,0:T(1,128)}', space=vmem, size = 0x9000, scoped, tag = 'internal scratch']
  %s0 = inlined_call_operand.hbm [shape: f32[2,8,16,16], index: 0, kind: input, shape index: {}]
  %s1 = inlined_call_operand.hbm [shape: f32[2,8,16,16], index: 1, kind: input, shape index: {}]
  %s2 = inlined_call_operand.hbm [shape: f32[2,16,16], index: 2, kind: output, shape index: {}]
  %s3 = sld [smem:[#allocation0]]
  $region49: #{tpu_custom_call.1} parent=0
    _
  %s5 = ssub.s32 1, %s3
  %s6 = scalar_select 0, %s5, %s3
  $region1: #{tpu_custom_call.1} parent=0
    #allocation2 [shape = 'u8[16384]{0}', space=vmem, size = 0x4000, scoped, tag = 'input window, operand 0']
    #allocation3 [shape = 's32[2]{0}', space=sflag, size = 0x8, scoped, tag = 'scoped memory for tpu_custom_call.1']
    #allocation4 [shape = 's32[2]{0}', space=sflag, size = 0x8, scoped, tag = 'scoped memory for tpu_custom_call.1']
    #allocation5 [shape = 'u8[16384]{0}', space=vmem, size = 0x4000, scoped, tag = 'input window, operand 1']
    #allocation6 [shape = 's32[2]{0}', space=sflag, size = 0x8, scoped, tag = 'scoped memory for tpu_custom_call.1']
    #allocation7 [shape = 'u8[16384]{0}', space=vmem, size = 0x4000, scoped, tag = 'output window, operand 0']
    %7 = vsyncpa [#allocation3], 0
    %s8 = scalar_lea.sflag [#allocation3], 1
    %9 = vsyncpa %s8, 0
    %10 = vsyncpa [#allocation6], 0
    %s11 = scalar_lea.sflag [#allocation6], 1
    %12 = vsyncpa %s11, 0
    %13 = vsyncpa [#allocation4], 0
    %s14 = scalar_lea.sflag [#allocation4], 1
    %15 = vsyncpa %s14, 0
    loop: start=0, step=1, limit=4
    $region2: #{tpu_custom_call.1} parent=1 // loop_pre_header
      _
    $region3: #{tpu_custom_call.1} parent=1 // loop_header
      %s17 = sphi 0, %s21
      %p18 = scmp.ge.s32.totalorder %s17, 4
      %s24 = sphi 0, %s36
      %s25 = sphi 0, %s32
      %s26 = sphi 0, %s24
      %s27 = sphi 0, %s25
      %s28 = sphi 0, %s26
      %s29 = sphi 0, %s27
      %s41 = sphi 0, %s43
      %s44 = sphi 0, %s41
      %s45 = sphi 0, %s44
      %s61 = sphi 0, %s45
      %s69 = sphi 0, %s71
      %s72 = sphi 0, %s69
      %s73 = sphi 0, %s72
      %s89 = sphi 0, %s73
      %s97 = sphi 0, %s99
      %s100 = sphi 0, %s97
      %s101 = sphi 0, %s100
      %s117 = sphi 0, %s101
    $region4: #{tpu_custom_call.1} parent=1 // loop_header_branch
      %20 = sbr.rel (%p18) target = $region8
    $region5: #{tpu_custom_call.1} parent=1 // loop_body
      %s22 = ssub.s32 %s17, 1
      %s23 = ssub.s32 %s17, 2
      %s30 = sadd.s32 1, %s25
      %p31 = scmp.ge.s32.totalorder %s30, 1
      %s32 = scalar_select %p31, 0, %s30
      %s33 = sadd.s32 1, %s24
      %s34 = scalar_select %p31, %s33, %s24
      %p35 = scmp.ge.s32.totalorder %s34, 2
      %s36 = scalar_select %p35, 0, %s34
      %s37 = ssub.s32 %s24, %s36
      %s38 = ssub.s32 %s25, %s32
      %s39 = sor.u32 %s37, %s38
      %p40 = scmp.eq.s32.totalorder %s39, 0
      %s42 = sadd.s32 %s41, 1
      %s43 = scalar_select %p40, %s41, %s42
      %p46 = pneg %p40
      %p47 = scmp.eq.s32.totalorder %s17, 1
      %p48 = por %p46, %p47
      %p49 = scmp.ne.s32.totalorder %s41, %s44
      %p50 = scmp.eq.s32.totalorder %s17, 0
      %p51 = por %p49, %p50
      %p52 = scmp.ne.s32.totalorder %s41, %s44
      %p53 = scmp.eq.s32.totalorder %s22, 1
      %p54 = por %p52, %p53
      %p55 = scmp.ne.s32.totalorder %s44, %s45
      %p56 = scmp.eq.s32.totalorder %s22, 0
      %p57 = por %p55, %p56
      %p58 = scmp.ne.s32.totalorder %s44, %s45
      %p59 = scmp.eq.s32.totalorder %s23, 1
      %p60 = por %p58, %p59
      %p62 = scmp.ne.s32.totalorder %s45, %s61
      %p63 = scmp.eq.s32.totalorder %s23, 0
      %p64 = por %p62, %p63
      %s65 = ssub.s32 %s24, %s36
      %s66 = ssub.s32 %s25, %s32
      %s67 = sor.u32 %s65, %s66
      %p68 = scmp.eq.s32.totalorder %s67, 0
      %s70 = sadd.s32 %s69, 1
      %s71 = scalar_select %p68, %s69, %s70
      %p74 = pneg %p68
      %p75 = scmp.eq.s32.totalorder %s17, 1
      %p76 = por %p74, %p75
      %p77 = scmp.ne.s32.totalorder %s69, %s72
      %p78 = scmp.eq.s32.totalorder %s17, 0
      %p79 = por %p77, %p78
      %p80 = scmp.ne.s32.totalorder %s69, %s72
      %p81 = scmp.eq.s32.totalorder %s22, 1
      %p82 = por %p80, %p81
      %p83 = scmp.ne.s32.totalorder %s72, %s73
      %p84 = scmp.eq.s32.totalorder %s22, 0
      %p85 = por %p83, %p84
      %p86 = scmp.ne.s32.totalorder %s72, %s73
      %p87 = scmp.eq.s32.totalorder %s23, 1
      %p88 = por %p86, %p87
      %p90 = scmp.ne.s32.totalorder %s73, %s89
      %p91 = scmp.eq.s32.totalorder %s23, 0
      %p92 = por %p90, %p91
      %s93 = ssub.s32 %s24, %s36
      %s94 = ssub.s32 %s25, %s32
      %s95 = sor.u32 %s93, %s94
      %p96 = scmp.eq.s32.totalorder %s95, 0
      %s98 = sadd.s32 %s97, 1
      %s99 = scalar_select %p96, %s97, %s98
      %p102 = pneg %p96
      %p103 = scmp.eq.s32.totalorder %s17, 1
      %p104 = por %p102, %p103
      %p105 = scmp.ne.s32.totalorder %s97, %s100
      %p106 = scmp.eq.s32.totalorder %s17, 0
      %p107 = por %p105, %p106
      %p108 = scmp.ne.s32.totalorder %s97, %s100
      %p109 = scmp.eq.s32.totalorder %s22, 1
      %p110 = por %p108, %p109
      %p111 = scmp.ne.s32.totalorder %s100, %s101
      %p112 = scmp.eq.s32.totalorder %s22, 0
      %p113 = por %p111, %p112
      %p114 = scmp.ne.s32.totalorder %s100, %s101
      %p115 = scmp.eq.s32.totalorder %s23, 1
      %p116 = por %p114, %p115
      %p118 = scmp.ne.s32.totalorder %s101, %s117
      %p119 = scmp.eq.s32.totalorder %s23, 0
      %p120 = por %p118, %p119
      %p121 = scmp.le.s32.totalorder 1, %s17
      %p122 = scmp.lt.s32.totalorder %s17, 3
      %p123 = pnand %p121, %p122
      %p124 = pneg %p123
      // Predicated region
      $region9: #{tpu_custom_call.1} parent=5 // pred_check
        _
      $region10: #{tpu_custom_call.1} parent=5 // pred_check_branch
        %126 = sbr.rel (%p123) target = $region12
      $region11: #{tpu_custom_call.1} parent=5 // pred_region
        %s127 = ssub.s32 %s17, 1
      $region12: #{tpu_custom_call.1} parent=5 // pred_fallthru
        _
      %p128 = scmp.lt.s32.totalorder %s17, 2
      // Predicated region
      $region13: #{tpu_custom_call.1} parent=5 // pred_check
        %p129 = pneg %p128
      $region14: #{tpu_custom_call.1} parent=5 // pred_check_branch
        %131 = sbr.rel (%p129) target = $region16
      $region15: #{tpu_custom_call.1} parent=5 // pred_region
        // Predicated region
        $region17: #{tpu_custom_call.1} parent=15 // pred_check
          %p132 = pneg %p51
        $region18: #{tpu_custom_call.1} parent=15 // pred_check_branch
          %134 = sbr.rel (%p132) target = $region20
        $region19: #{tpu_custom_call.1} parent=15 // pred_region
          %s135 = sand.u32 %s41, 1
          %s136 = scalar_lea.sflag [#allocation3], %s135
          %s137 = sand.u32 %s41, 1
          %s138 = smul.addr %s137, 16
          %s139 = scalar_lea.vmem [#allocation2], %s138
          %s140 = smul.u32 2, %s25
          %142 = vsyncadd %s136, 0
          %s143 = smul.addr %s24, 16
          %s144 = sadd.s32 %s140, %s143
          %s145 = smul.addr %s144, 8
          %s146 = scalar_lea.hbm %s0, %s145
          %s147 = sshll.u32 %s146, 4
          %s148 = int_to_ptr.hbm [resolvable:$true] %s147
          %s149 = sshll.u32 %s139, 4
          %s150 = int_to_ptr.vmem [resolvable:$true] %s149
          %155 = dma.hbm_to_vmem [thread:$0]  %s148, 256, %s150, %s136, 128, 128, 8
        $region20: #{tpu_custom_call.1} parent=15 // pred_fallthru
          _
        // Predicated region
        $region21: #{tpu_custom_call.1} parent=15 // pred_check
          %p156 = pneg %p79
        $region22: #{tpu_custom_call.1} parent=15 // pred_check_branch
          %158 = sbr.rel (%p156) target = $region24
        $region23: #{tpu_custom_call.1} parent=15 // pred_region
          %s159 = sand.u32 %s69, 1
          %s160 = scalar_lea.sflag [#allocation6], %s159
          %s161 = sand.u32 %s69, 1
          %s162 = smul.addr %s161, 16
          %s163 = scalar_lea.vmem [#allocation5], %s162
          %s164 = smul.u32 2, %s25
          %166 = vsyncadd %s160, 0
          %s167 = sadd.s32 %s164, 10
          %s168 = smul.addr %s24, 16
          %s169 = sadd.s32 %s167, %s168
          %s170 = smul.addr %s169, 8
          %s171 = scalar_lea.hbm %s1, %s170
          %s172 = sshll.u32 %s171, 4
          %s173 = int_to_ptr.hbm [resolvable:$true] %s172
          %s174 = sshll.u32 %s163, 4
          %s175 = int_to_ptr.vmem [resolvable:$true] %s174
          %180 = dma.hbm_to_vmem [thread:$0]  %s173, 256, %s175, %s160, 128, 128, 8
        $region24: #{tpu_custom_call.1} parent=15 // pred_fallthru
          _
      $region16: #{tpu_custom_call.1} parent=5 // pred_fallthru
        _
      %p181 = scmp.le.s32.totalorder 1, %s17
      %p182 = scmp.lt.s32.totalorder %s17, 3
      %p183 = pnand %p181, %p182
      %p184 = pneg %p183
      // Predicated region
      $region25: #{tpu_custom_call.1} parent=5 // pred_check
        _
      $region26: #{tpu_custom_call.1} parent=5 // pred_check_branch
        %186 = sbr.rel (%p183) target = $region28
      $region27: #{tpu_custom_call.1} parent=5 // pred_region
        %s187 = ssub.s32 %s17, 1
        %s188 = sand.u32 %s44, 1
        %s189 = scalar_lea.sflag [#allocation3], %s188
        %s190 = sand.u32 %s44, 1
        %s191 = smul.addr %s190, 16
        %s192 = scalar_lea.vmem [#allocation2], %s191
        // Predicated region
        $region29: #{tpu_custom_call.1} parent=27 // pred_check
          %p193 = pneg %p57
        $region30: #{tpu_custom_call.1} parent=27 // pred_check_branch
          %195 = sbr.rel (%p193) target = $region32
        $region31: #{tpu_custom_call.1} parent=27 // pred_region
          %197 = dma.done %s189, 256
        $region32: #{tpu_custom_call.1} parent=27 // pred_fallthru
          _
        %s198 = sand.u32 %s72, 1
        %s199 = scalar_lea.sflag [#allocation6], %s198
        %s200 = sand.u32 %s72, 1
        %s201 = smul.addr %s200, 16
        %s202 = scalar_lea.vmem [#allocation5], %s201
        // Predicated region
        $region33: #{tpu_custom_call.1} parent=27 // pred_check
          %p203 = pneg %p85
        $region34: #{tpu_custom_call.1} parent=27 // pred_check_branch
          %205 = sbr.rel (%p203) target = $region36
        $region35: #{tpu_custom_call.1} parent=27 // pred_region
          %207 = dma.done %s199, 256
        $region36: #{tpu_custom_call.1} parent=27 // pred_fallthru
          _
        %s208 = sand.u32 %s44, 1
        %s209 = scalar_lea.sflag [#allocation3], %s208
        %s210 = sand.u32 %s44, 1
        %s211 = smul.addr %s210, 16
        %s212 = scalar_lea.vmem [#allocation2], %s211
        %p213 = pneg %p57
        %p214 = pneg %p54
        %s215 = sand.u32 %s72, 1
        %s216 = scalar_lea.sflag [#allocation6], %s215
        %s217 = sand.u32 %s72, 1
        %s218 = smul.addr %s217, 16
        %s219 = scalar_lea.vmem [#allocation5], %s218
        %p220 = pneg %p85
        %p221 = pneg %p82
        %p222 = pneg %p113
        %p223 = pneg %p110
        %s224 = sand.u32 %s100, 1
        %s225 = scalar_lea.sflag [#allocation4], %s224
        %s226 = sand.u32 %s100, 1
        %s227 = smul.addr %s226, 16
        %s228 = scalar_lea.vmem [#allocation7], %s227
        %s229 = smul.u32 2, %s27
        %s230 = smul.u32 2, %s27
        %s231 = smul.u32 2, %s27
        %v232 = vld [vmem:[%s192] sm:$0xff]
        %v233 = vld [vmem:[%s192 + $0x8] sm:$0xff]
        %v234 = vld [vmem:[%s202] sm:$0xff]
        %v235 = vld [vmem:[%s202 + $0x8] sm:$0xff]
        %v236 = vadd.f32 %v232, %v234
        %v237 = vadd.f32 %v233, %v235
        %vm238 = vcmask 130048
        %239 = vst.msk [vmem:[%s228] sm:$0xff] %vm238, %v236
        %240 = vst.msk [vmem:[%s228 + $0x8] sm:$0xff] %vm238, %v237
        %s241 = sand.u32 %s100, 1
        %s242 = scalar_lea.sflag [#allocation4], %s241
        %s243 = sand.u32 %s100, 1
        %s244 = smul.addr %s243, 16
        %s245 = scalar_lea.vmem [#allocation7], %s244
        // Predicated region
        $region37: #{tpu_custom_call.1} parent=27 // pred_check
          %p246 = pneg %p110
        $region38: #{tpu_custom_call.1} parent=27 // pred_check_branch
          %248 = sbr.rel (%p246) target = $region40
        $region39: #{tpu_custom_call.1} parent=27 // pred_region
          %s249 = smul.u32 2, %s27
          %251 = vsyncadd %s242, 0
          %s252 = smul.addr %s26, 2
          %s253 = sadd.s32 %s249, %s252
          %s254 = smul.addr %s253, 8
          %s255 = scalar_lea.hbm %s2, %s254
          %s256 = sshll.u32 %s245, 4
          %s257 = int_to_ptr.vmem [resolvable:$true] %s256
          %s258 = sshll.u32 %s255, 4
          %s259 = int_to_ptr.hbm [resolvable:$true] %s258
          %264 = dma.vmem_to_hbm [thread:$0]  %s257, 256, %s259, %s242, 128, 128, 8
        $region40: #{tpu_custom_call.1} parent=27 // pred_fallthru
          _
      $region28: #{tpu_custom_call.1} parent=5 // pred_fallthru
        _
      %p265 = scmp.le.s32.totalorder 2, %s17
      // Predicated region
      $region41: #{tpu_custom_call.1} parent=5 // pred_check
        %p266 = pneg %p265
      $region42: #{tpu_custom_call.1} parent=5 // pred_check_branch
        %268 = sbr.rel (%p266) target = $region44
      $region43: #{tpu_custom_call.1} parent=5 // pred_region
        %s269 = ssub.s32 %s17, 2
        // Predicated region
        $region45: #{tpu_custom_call.1} parent=43 // pred_check
          %p270 = pneg %p116
        $region46: #{tpu_custom_call.1} parent=43 // pred_check_branch
          %272 = sbr.rel (%p270) target = $region48
        $region47: #{tpu_custom_call.1} parent=43 // pred_region
          %s273 = sand.u32 %s101, 1
          %s274 = scalar_lea.sflag [#allocation4], %s273
          %s275 = sand.u32 %s101, 1
          %s276 = smul.addr %s275, 16
          %s277 = scalar_lea.vmem [#allocation7], %s276
          %279 = dma.done %s274, 256
        $region48: #{tpu_custom_call.1} parent=43 // pred_fallthru
          _
      $region44: #{tpu_custom_call.1} parent=5 // pred_fallthru
        _
    $region6: #{tpu_custom_call.1} parent=1 // loop_footer
      %s21 = sadd.s32 1, %s17
    $region7: #{tpu_custom_call.1} parent=1 // loop_footer_branch
      %16 = sbr.rel target = $region3
    $region8: #{tpu_custom_call.1} parent=1 // loop_exit
      _
    %280 = vsyncpa [#allocation3], 1
    %s281 = scalar_lea.sflag [#allocation3], 1
    %282 = vsyncpa %s281, 1
    %283 = vsyncpa [#allocation6], 1
    %s284 = scalar_lea.sflag [#allocation6], 1
    %285 = vsyncpa %s284, 1
    %286 = vsyncpa [#allocation4], 1
    %s287 = scalar_lea.sflag [#allocation4], 1
    %288 = vsyncpa %s287, 1

</llo_original>
